<compile_context>
chip_gen: v5e
topology: v5e:2x2
jax: 0.10.0
libtpu: 0.0.40
codegen_flags: <defaults>
</compile_context>

<pallas_src>
import jax
import jax.numpy as jnp
from jax.experimental import pallas as pl
from jax.experimental.pallas import tpu as pltpu

LANE = 128


def _focal_weight(one_minus_pt, gamma):
    """(1 - p_t) ** gamma without EUP transcendentals for integer gamma."""
    g = float(gamma)
    if g == int(g) and int(g) >= 0:
        gi = int(g)
        if gi == 0:
            return jnp.ones_like(one_minus_pt)
        fw = one_minus_pt
        for _ in range(gi - 1):
            fw = fw * one_minus_pt
        return fw
    return jnp.power(one_minus_pt, g)


def var_focal_loss_2d(preds, targets, num_classes, gamma=2.0,
                      tile_rows=None, spatial_chunks=None):
    """Pallas TPU implementation of VarFocalLoss2D.forward.

    preds:   (N, C, H, W) float probabilities (f32 or bf16; streamed as-is)
    targets: (N, 1, H, W) integer class indices
    returns: scalar float32 loss
    """
    N, C, H, W = preds.shape
    assert C == num_classes
    HW = H * W
    smooth = 1e-6
    itemsize = preds.dtype.itemsize

    rows = -(-HW // LANE)                        # ceil(HW / 128)

    # ---- spatial tile size (sublane rows of 128 pixels) ------------------
    # ~8 MiB of preds per block (double-buffered), capped at 4096 rows so the
    # in-kernel (S,128) temporaries stay small; multiple of 8 sublanes.
    if tile_rows is None:
        target_bytes = 8 * 1024 * 1024
        max_rows = (target_bytes // (C * LANE * itemsize)) // 8 * 8
        max_rows = max(8, min(4096, max_rows))
    else:
        max_rows = max(8, (int(tile_rows) // 8) * 8)
    S = rows if rows <= max_rows else max_rows
    num_tiles = -(-rows // S)
    last_tile = num_tiles - 1

    # ---- megacore split of spatial tiles (v7x; no-op on single-TC chips) --
    if spatial_chunks is None:
        n_outer = 2 if (N % 2 == 1 and num_tiles >= 2) else 1
    else:
        n_outer = max(1, min(int(spatial_chunks), num_tiles))
    n_inner = -(-num_tiles // n_outer)

    # ---- layout: only the <128 px lane remainder is padded (no full-array
    # pad pass); rows are NOT rounded up to a multiple of S ------------------
    p = preds.reshape(N, C, HW)                  # keep native dtype (bf16 ok)
    t = targets.reshape(N, 1, HW).astype(jnp.int32)
    if HW % LANE != 0:
        pad = rows * LANE - HW
        p = jnp.pad(p, ((0, 0), (0, 0), (0, pad)))
        t = jnp.pad(t, ((0, 0), (0, 0), (0, pad)))
    p = p.reshape(N, C, rows, LANE)
    t = t.reshape(N, 1, rows, LANE)

    acc_rows = 8 if S % 8 == 0 else 1            # (8,128) accumulators when aligned

    def kernel(p_ref, t_ref, ocf_ref, oc_ref, of_ref, acc_cf, acc_c, acc_f):
        o = pl.program_id(0)
        i = pl.program_id(2)

        @pl.when(i == 0)
        def _():
            acc_cf[...] = jnp.zeros_like(acc_cf)
            acc_c[...] = jnp.zeros_like(acc_c)
            acc_f[...] = jnp.zeros_like(acc_f)

        tgt = t_ref[0, 0]                                    # (S, 128) int32

        # Unrolled per-class reduction: only (S,128) running state, no
        # (C,S,128) temporaries.  Strict '>' keeps the FIRST argmax occurrence
        # (exact torch.argmax semantics).
        slab = p_ref[0, 0].astype(jnp.float32)               # (S, 128)
        p_t = jnp.where(tgt == 0, slab, 0.0)
        pmax = slab
        amax = jnp.zeros((S, LANE), jnp.int32)
        for c in range(1, C):
            slab = p_ref[0, c].astype(jnp.float32)
            p_t = jnp.where(tgt == c, slab, p_t)
            newmax = slab > pmax
            amax = jnp.where(newmax, c, amax)
            pmax = jnp.maximum(pmax, slab)
        correct = amax == tgt

        # Mask lane padding / ragged-last-block OOB pixels.  The OOB DMA region
        # is undefined, so use jnp.where masking and sanitize p_t before log.
        tile = o * n_inner + i                                # logical tile idx
        row = jax.lax.broadcasted_iota(jnp.int32, (S, LANE), 0)
        lane = jax.lax.broadcasted_iota(jnp.int32, (S, LANE), 1)
        pix = (tile * S + row) * LANE + lane                  # int32: ok for HW < 2**31
        valid = pix < HW

        p_t = jnp.where(valid, p_t, 1.0)
        focal = -_focal_weight(1.0 - p_t, gamma) * jnp.log(p_t + smooth)
        focal = jnp.where(valid, focal, 0.0)
        correct_f = jnp.where(jnp.logical_and(correct, valid), 1.0, 0.0)

        def tile_reduce(x):                                   # whole-vreg VPU adds
            if S % 8 == 0:
                return jnp.sum(x.reshape(S // 8, 8, LANE), axis=0)
            return jnp.sum(x, axis=0, keepdims=True)

        acc_f[...] += tile_reduce(focal)
        acc_c[...] += tile_reduce(correct_f)
        acc_cf[...] += tile_reduce(correct_f * focal)

        @pl.when(i == n_inner - 1)
        def _():
            # sublane (XLU) reduce deferred to once per (chunk, batch)
            ocf_ref[0, 0] = jnp.sum(acc_cf[...], axis=0, keepdims=True)
            oc_ref[0, 0] = jnp.sum(acc_c[...], axis=0, keepdims=True)
            of_ref[0, 0] = jnp.sum(acc_f[...], axis=0, keepdims=True)

    # Index maps clamp the logical tile so the (at most n_outer-1) overhanging
    # inner iterations re-read the last block; their pixels fail the valid
    # mask and contribute nothing.
    def in_map(o, b, i):
        return (b, 0, jnp.minimum(o * n_inner + i, last_tile), 0)

    def out_map(o, b, i):
        return (o, b, 0, 0)

    part = jax.ShapeDtypeStruct((n_outer, N, 1, LANE), jnp.float32)
    out_cf, out_c, out_f = pl.pallas_call(
        kernel,
        out_shape=(part, part, part),
        grid_spec=pltpu.PrefetchScalarGridSpec(
            num_scalar_prefetch=0,
            grid=(n_outer, N, n_inner),
            in_specs=[
                pl.BlockSpec((1, C, S, LANE), in_map),
                pl.BlockSpec((1, 1, S, LANE), in_map),
            ],
            out_specs=[
                pl.BlockSpec((1, 1, 1, LANE), out_map),   # sum(correct * focal)
                pl.BlockSpec((1, 1, 1, LANE), out_map),   # count(correct)
                pl.BlockSpec((1, 1, 1, LANE), out_map),   # sum(focal)
            ],
            scratch_shapes=[
                pltpu.VMEM((acc_rows, LANE), jnp.float32),
                pltpu.VMEM((acc_rows, LANE), jnp.float32),
                pltpu.VMEM((acc_rows, LANE), jnp.float32),
            ],
        ),
        compiler_params=pltpu.CompilerParams(
            dimension_semantics=("parallel", "parallel", "arbitrary"),
            vmem_limit_bytes=48 * 1024 * 1024,
        ),
    )(p, t)

    # Tiny per-batch finalize + batch mean in the wrapper.
    s_cf = jnp.sum(out_cf, axis=(0, 2, 3))        # (N,)
    s_c = jnp.sum(out_c, axis=(0, 2, 3))
    s_f = jnp.sum(out_f, axis=(0, 2, 3))
    s_if = s_f - s_cf                             # incorrect = total - correct
    cnt_i = float(HW) - s_c
    loss = s_cf / (s_c + smooth) + s_if / (cnt_i + smooth)
    return jnp.mean(loss)


def ref_var_focal_loss_2d(preds, targets, num_classes, gamma=2.0):
    """Pure-JAX reference matching the PyTorch forward."""
    smooth = 1e-6
    t = targets[:, 0]                                                   # (N, H, W)
    oh = (jnp.arange(num_classes)[None, :, None, None] ==
          t[:, None, :, :]).astype(jnp.float32)                         # (N, C, H, W)
    correct = (jnp.argmax(preds, axis=1) == t).astype(jnp.float32)
    incorrect = 1.0 - correct
    p_t = jnp.sum(preds.astype(jnp.float32) * oh, axis=1)
    focal = -jnp.power(1.0 - p_t, gamma) * jnp.log(p_t + smooth)
    cl = jnp.sum(correct * focal, axis=(1, 2)) / (jnp.sum(correct, axis=(1, 2)) + smooth)
    il = jnp.sum(incorrect * focal, axis=(1, 2)) / (jnp.sum(incorrect, axis=(1, 2)) + smooth)
    return jnp.mean(cl + il)


if __name__ == "__main__":
    key = jax.random.PRNGKey(0)
    k1, k2, k3, k4, k5, k6 = jax.random.split(key, 6)

    # Case 1: small shape, single spatial tile (HW multiple of 128, no pad).
    N, C, H, W = 2, 4, 16, 16
    logits = jax.random.normal(k1, (N, C, H, W), jnp.float32)
    preds = jax.nn.softmax(logits, axis=1)
    targets = jax.random.randint(k2, (N, 1, H, W), 0, C, jnp.int32)
    out = jax.block_until_ready(var_focal_loss_2d(preds, targets, num_classes=C, gamma=2.0))
    ref = ref_var_focal_loss_2d(preds, targets, num_classes=C, gamma=2.0)
    assert jnp.allclose(out, ref, rtol=1e-4, atol=1e-5), (float(out), float(ref))

    # Case 2: HW not a multiple of 128 + forced multi-tile spatial grid with a
    # ragged last block (exercises lane pad, OOB masking, cross-tile accumulators).
    N2, C2, H2, W2 = 2, 5, 40, 40                 # HW = 1600 -> 13 rows of 128
    logits2 = jax.random.normal(k3, (N2, C2, H2, W2), jnp.float32)
    preds2 = jax.nn.softmax(logits2, axis=1)
    targets2 = jax.random.randint(k4, (N2, 1, H2, W2), 0, C2, jnp.int32)
    out2 = jax.block_until_ready(
        var_focal_loss_2d(preds2, targets2, num_classes=C2, gamma=2.0, tile_rows=8))
    ref2 = ref_var_focal_loss_2d(preds2, targets2, num_classes=C2, gamma=2.0)
    assert jnp.allclose(out2, ref2, rtol=1e-4, atol=1e-5), (float(out2), float(ref2))

    # Case 3: N == 1 -> 2-way spatial-chunk megacore split with an overhanging
    # (clamped) inner iteration and a ragged last block.
    N3, C3, H3, W3 = 1, 3, 48, 48                 # HW = 2304 -> 18 rows, 3 tiles of 8
    logits3 = jax.random.normal(k5, (N3, C3, H3, W3), jnp.float32)
    preds3 = jax.nn.softmax(logits3, axis=1)
    targets3 = jax.random.randint(k6, (N3, 1, H3, W3), 0, C3, jnp.int32)
    out3 = jax.block_until_ready(
        var_focal_loss_2d(preds3, targets3, num_classes=C3, gamma=2.0, tile_rows=8))
    ref3 = ref_var_focal_loss_2d(preds3, targets3, num_classes=C3, gamma=2.0)
    assert jnp.allclose(out3, ref3, rtol=1e-4, atol=1e-5), (float(out3), float(ref3))

    print("KERNEL_OK")
</pallas_src>

<mosaic_0001>
module attributes {stable_mosaic.version = 11 : i64} {
  func.func @kernel(%arg0: i32, %arg1: i32, %arg2: i32, %arg3: memref<1x4x2x128xf32, #tpu.memory_space<vmem>>, %arg4: memref<1x1x2x128xi32, #tpu.memory_space<vmem>>, %arg5: memref<1x1x1x128xf32, #tpu.memory_space<vmem>>, %arg6: memref<1x1x1x128xf32, #tpu.memory_space<vmem>>, %arg7: memref<1x1x1x128xf32, #tpu.memory_space<vmem>>, %arg8: memref<1x128xf32, #tpu.memory_space<vmem>>, %arg9: memref<1x128xf32, #tpu.memory_space<vmem>>, %arg10: memref<1x128xf32, #tpu.memory_space<vmem>>) attributes {dimension_semantics = [#tpu.dimension_semantics<parallel>, #tpu.dimension_semantics<parallel>, #tpu.dimension_semantics<arbitrary>], iteration_bounds = array<i64: 1, 2, 1>, scalar_prefetch = 0 : i64, scratch_operands = 3 : i64, tpu.core_type = #tpu.core_type<tc>, window_params = [{transform_indices = @transform_0, window_bounds = array<i64: 1, 4, 2, 128>}, {transform_indices = @transform_1, window_bounds = array<i64: 1, 1, 2, 128>}, {transform_indices = @transform_2, window_bounds = array<i64: 1, 1, 1, 128>}, {transform_indices = @transform_3, window_bounds = array<i64: 1, 1, 1, 128>}, {transform_indices = @transform_4, window_bounds = array<i64: 1, 1, 1, 128>}]} {
    %c0_i32 = arith.constant 0 : i32
    %0 = arith.cmpi eq, %arg2, %c0_i32 : i32
    %1 = arith.extui %0 : i1 to i32
    %c0_i32_0 = arith.constant 0 : i32
    %2 = arith.cmpi ne, %1, %c0_i32_0 : i32
    scf.if %2 {
      %cst_48 = arith.constant 0.000000e+00 : f32
      %87 = vector.broadcast %cst_48 : f32 to vector<1x128xf32>
      %c0_49 = arith.constant 0 : index
      %c0_50 = arith.constant 0 : index
      %88 = vector.load %arg8[%c0_49, %c0_50] : memref<1x128xf32, #tpu.memory_space<vmem>>, vector<1x128xf32>
      tpu.vector_store %arg8[%c0_49, %c0_50], %87 {strides = array<i32>} : memref<1x128xf32, #tpu.memory_space<vmem>>, vector<1x128xf32>,
      %cst_51 = arith.constant 0.000000e+00 : f32
      %89 = vector.broadcast %cst_51 : f32 to vector<1x128xf32>
      %c0_52 = arith.constant 0 : index
      %c0_53 = arith.constant 0 : index
      %90 = vector.load %arg9[%c0_52, %c0_53] : memref<1x128xf32, #tpu.memory_space<vmem>>, vector<1x128xf32>
      tpu.vector_store %arg9[%c0_52, %c0_53], %89 {strides = array<i32>} : memref<1x128xf32, #tpu.memory_space<vmem>>, vector<1x128xf32>,
      %cst_54 = arith.constant 0.000000e+00 : f32
      %91 = vector.broadcast %cst_54 : f32 to vector<1x128xf32>
      %c0_55 = arith.constant 0 : index
      %c0_56 = arith.constant 0 : index
      %92 = vector.load %arg10[%c0_55, %c0_56] : memref<1x128xf32, #tpu.memory_space<vmem>>, vector<1x128xf32>
      tpu.vector_store %arg10[%c0_55, %c0_56], %91 {strides = array<i32>} : memref<1x128xf32, #tpu.memory_space<vmem>>, vector<1x128xf32>,
    } else {
    }
    %c0 = arith.constant 0 : index
    %c0_1 = arith.constant 0 : index
    %c0_2 = arith.constant 0 : index
    %c0_3 = arith.constant 0 : index
    %3 = vector.load %arg4[%c0, %c0_1, %c0_2, %c0_3] : memref<1x1x2x128xi32, #tpu.memory_space<vmem>>, vector<1x1x2x128xi32>
    %4 = vector.shape_cast %3 : vector<1x1x2x128xi32> to vector<2x128xi32>
    %c0_4 = arith.constant 0 : index
    %c0_5 = arith.constant 0 : index
    %c0_6 = arith.constant 0 : index
    %c0_7 = arith.constant 0 : index
    %5 = vector.load %arg3[%c0_4, %c0_5, %c0_6, %c0_7] : memref<1x4x2x128xf32, #tpu.memory_space<vmem>>, vector<1x1x2x128xf32>
    %6 = vector.shape_cast %5 : vector<1x1x2x128xf32> to vector<2x128xf32>
    %c0_i32_8 = arith.constant 0 : i32
    %7 = vector.broadcast %c0_i32_8 : i32 to vector<2x128xi32>
    %8 = arith.cmpi eq, %4, %7 : vector<2x128xi32>
    %cst = arith.constant 0.000000e+00 : f32
    %9 = vector.broadcast %cst : f32 to vector<2x128xf32>
    %10 = arith.select %8, %6, %9 : vector<2x128xi1>, vector<2x128xf32>
    %c0_i32_9 = arith.constant 0 : i32
    %11 = vector.broadcast %c0_i32_9 : i32 to vector<2x128xi32>
    %c0_10 = arith.constant 0 : index
    %c1 = arith.constant 1 : index
    %c0_11 = arith.constant 0 : index
    %c0_12 = arith.constant 0 : index
    %12 = vector.load %arg3[%c0_10, %c1, %c0_11, %c0_12] : memref<1x4x2x128xf32, #tpu.memory_space<vmem>>, vector<1x1x2x128xf32>
    %13 = vector.shape_cast %12 : vector<1x1x2x128xf32> to vector<2x128xf32>
    %c1_i32 = arith.constant 1 : i32
    %14 = vector.broadcast %c1_i32 : i32 to vector<2x128xi32>
    %15 = arith.cmpi eq, %4, %14 : vector<2x128xi32>
    %16 = arith.select %15, %13, %10 : vector<2x128xi1>, vector<2x128xf32>
    %17 = arith.cmpf ogt, %13, %6 : vector<2x128xf32>
    %c1_i32_13 = arith.constant 1 : i32
    %18 = vector.broadcast %c1_i32_13 : i32 to vector<2x128xi32>
    %19 = arith.select %17, %18, %11 : vector<2x128xi1>, vector<2x128xi32>
    %20 = arith.maximumf %6, %13 : vector<2x128xf32>
    %c0_14 = arith.constant 0 : index
    %c2 = arith.constant 2 : index
    %c0_15 = arith.constant 0 : index
    %c0_16 = arith.constant 0 : index
    %21 = vector.load %arg3[%c0_14, %c2, %c0_15, %c0_16] : memref<1x4x2x128xf32, #tpu.memory_space<vmem>>, vector<1x1x2x128xf32>
    %22 = vector.shape_cast %21 : vector<1x1x2x128xf32> to vector<2x128xf32>
    %c2_i32 = arith.constant 2 : i32
    %23 = vector.broadcast %c2_i32 : i32 to vector<2x128xi32>
    %24 = arith.cmpi eq, %4, %23 : vector<2x128xi32>
    %25 = arith.select %24, %22, %16 : vector<2x128xi1>, vector<2x128xf32>
    %26 = arith.cmpf ogt, %22, %20 : vector<2x128xf32>
    %c2_i32_17 = arith.constant 2 : i32
    %27 = vector.broadcast %c2_i32_17 : i32 to vector<2x128xi32>
    %28 = arith.select %26, %27, %19 : vector<2x128xi1>, vector<2x128xi32>
    %29 = arith.maximumf %20, %22 : vector<2x128xf32>
    %c0_18 = arith.constant 0 : index
    %c3 = arith.constant 3 : index
    %c0_19 = arith.constant 0 : index
    %c0_20 = arith.constant 0 : index
    %30 = vector.load %arg3[%c0_18, %c3, %c0_19, %c0_20] : memref<1x4x2x128xf32, #tpu.memory_space<vmem>>, vector<1x1x2x128xf32>
    %31 = vector.shape_cast %30 : vector<1x1x2x128xf32> to vector<2x128xf32>
    %c3_i32 = arith.constant 3 : i32
    %32 = vector.broadcast %c3_i32 : i32 to vector<2x128xi32>
    %33 = arith.cmpi eq, %4, %32 : vector<2x128xi32>
    %34 = arith.select %33, %31, %25 : vector<2x128xi1>, vector<2x128xf32>
    %35 = arith.cmpf ogt, %31, %29 : vector<2x128xf32>
    %c3_i32_21 = arith.constant 3 : i32
    %36 = vector.broadcast %c3_i32_21 : i32 to vector<2x128xi32>
    %37 = arith.select %35, %36, %28 : vector<2x128xi1>, vector<2x128xi32>
    %38 = arith.cmpi eq, %37, %4 : vector<2x128xi32>
    %c1_i32_22 = arith.constant 1 : i32
    %39 = arith.muli %arg0, %c1_i32_22 : i32
    %40 = arith.addi %39, %arg2 : i32
    %41 = tpu.iota {dimensions = array<i32: 0>} : vector<2x128xi32>
    %42 = tpu.iota {dimensions = array<i32: 1>} : vector<2x128xi32>
    %c2_i32_23 = arith.constant 2 : i32
    %43 = arith.muli %40, %c2_i32_23 : i32
    %44 = vector.broadcast %43 : i32 to vector<2x128xi32>
    %45 = arith.addi %44, %41 : vector<2x128xi32>
    %c128_i32 = arith.constant 128 : i32
    %46 = vector.broadcast %c128_i32 : i32 to vector<2x128xi32>
    %47 = arith.muli %45, %46 : vector<2x128xi32>
    %48 = arith.addi %47, %42 : vector<2x128xi32>
    %c256_i32 = arith.constant 256 : i32
    %49 = vector.broadcast %c256_i32 : i32 to vector<2x128xi32>
    %50 = arith.cmpi slt, %48, %49 : vector<2x128xi32>
    %cst_24 = arith.constant 1.000000e+00 : f32
    %51 = vector.broadcast %cst_24 : f32 to vector<2x128xf32>
    %52 = arith.select %50, %34, %51 : vector<2x128xi1>, vector<2x128xf32>
    %cst_25 = arith.constant 1.000000e+00 : f32
    %53 = vector.broadcast %cst_25 : f32 to vector<2x128xf32>
    %54 = arith.subf %53, %52 : vector<2x128xf32>
    %55 = arith.mulf %54, %54 : vector<2x128xf32>
    %cst_26 = arith.constant 0.000000e+00 : f32
    %56 = vector.broadcast %cst_26 : f32 to vector<2x128xf32>
    %57 = arith.subf %56, %55 : vector<2x128xf32>
    %cst_27 = arith.constant 9.99999997E-7 : f32
    %58 = vector.broadcast %cst_27 : f32 to vector<2x128xf32>
    %59 = arith.addf %52, %58 : vector<2x128xf32>
    %60 = math.log %59 : vector<2x128xf32>
    %61 = arith.mulf %57, %60 : vector<2x128xf32>
    %cst_28 = arith.constant 0.000000e+00 : f32
    %62 = vector.broadcast %cst_28 : f32 to vector<2x128xf32>
    %63 = arith.select %50, %61, %62 : vector<2x128xi1>, vector<2x128xf32>
    %64 = arith.andi %38, %50 : vector<2x128xi1>
    %cst_29 = arith.constant 1.000000e+00 : f32
    %cst_30 = arith.constant 0.000000e+00 : f32
    %65 = vector.broadcast %cst_29 : f32 to vector<2x128xf32>
    %66 = vector.broadcast %cst_30 : f32 to vector<2x128xf32>
    %67 = arith.select %64, %65, %66 : vector<2x128xi1>, vector<2x128xf32>
    %c0_31 = arith.constant 0 : index
    %c0_32 = arith.constant 0 : index
    %68 = vector.load %arg10[%c0_31, %c0_32] : memref<1x128xf32, #tpu.memory_space<vmem>>, vector<1x128xf32>
    %cst_33 = arith.constant dense<0.000000e+00> : vector<128xf32>
    %69 = vector.multi_reduction <add>, %63, %cst_33 [0] : vector<2x128xf32> to vector<128xf32>
    %70 = vector.shape_cast %69 : vector<128xf32> to vector<1x128xf32>
    %71 = arith.addf %68, %70 : vector<1x128xf32>
    %c0_34 = arith.constant 0 : index
    %c0_35 = arith.constant 0 : index
    %72 = vector.load %arg10[%c0_34, %c0_35] : memref<1x128xf32, #tpu.memory_space<vmem>>, vector<1x128xf32>
    tpu.vector_store %arg10[%c0_34, %c0_35], %71 {strides = array<i32>} : memref<1x128xf32, #tpu.memory_space<vmem>>, vector<1x128xf32>,
    %c0_36 = arith.constant 0 : index
    %c0_37 = arith.constant 0 : index
    %73 = vector.load %arg9[%c0_36, %c0_37] : memref<1x128xf32, #tpu.memory_space<vmem>>, vector<1x128xf32>
    %cst_38 = arith.constant dense<0.000000e+00> : vector<128xf32>
    %74 = vector.multi_reduction <add>, %67, %cst_38 [0] : vector<2x128xf32> to vector<128xf32>
    %75 = vector.shape_cast %74 : vector<128xf32> to vector<1x128xf32>
    %76 = arith.addf %73, %75 : vector<1x128xf32>
    %c0_39 = arith.constant 0 : index
    %c0_40 = arith.constant 0 : index
    %77 = vector.load %arg9[%c0_39, %c0_40] : memref<1x128xf32, #tpu.memory_space<vmem>>, vector<1x128xf32>
    tpu.vector_store %arg9[%c0_39, %c0_40], %76 {strides = array<i32>} : memref<1x128xf32, #tpu.memory_space<vmem>>, vector<1x128xf32>,
    %c0_41 = arith.constant 0 : index
    %c0_42 = arith.constant 0 : index
    %78 = vector.load %arg8[%c0_41, %c0_42] : memref<1x128xf32, #tpu.memory_space<vmem>>, vector<1x128xf32>
    %79 = arith.mulf %67, %63 : vector<2x128xf32>
    %cst_43 = arith.constant dense<0.000000e+00> : vector<128xf32>
    %80 = vector.multi_reduction <add>, %79, %cst_43 [0] : vector<2x128xf32> to vector<128xf32>
    %81 = vector.shape_cast %80 : vector<128xf32> to vector<1x128xf32>
    %82 = arith.addf %78, %81 : vector<1x128xf32>
    %c0_44 = arith.constant 0 : index
    %c0_45 = arith.constant 0 : index
    %83 = vector.load %arg8[%c0_44, %c0_45] : memref<1x128xf32, #tpu.memory_space<vmem>>, vector<1x128xf32>
    tpu.vector_store %arg8[%c0_44, %c0_45], %82 {strides = array<i32>} : memref<1x128xf32, #tpu.memory_space<vmem>>, vector<1x128xf32>,
    %c0_i32_46 = arith.constant 0 : i32
    %84 = arith.cmpi eq, %arg2, %c0_i32_46 : i32
    %85 = arith.extui %84 : i1 to i32
    %c0_i32_47 = arith.constant 0 : i32
    %86 = arith.cmpi ne, %85, %c0_i32_47 : i32
    scf.if %86 {
      %c0_48 = arith.constant 0 : index
      %c0_49 = arith.constant 0 : index
      %87 = vector.load %arg8[%c0_48, %c0_49] : memref<1x128xf32, #tpu.memory_space<vmem>>, vector<1x128xf32>
      %cst_50 = arith.constant dense<0.000000e+00> : vector<128xf32>
      %88 = vector.multi_reduction <add>, %87, %cst_50 [0] : vector<1x128xf32> to vector<128xf32>
      %89 = vector.shape_cast %88 : vector<128xf32> to vector<1x128xf32>
      %c0_51 = arith.constant 0 : index
      %c0_52 = arith.constant 0 : index
      %c0_53 = arith.constant 0 : index
      %c0_54 = arith.constant 0 : index
      %90 = vector.load %arg5[%c0_51, %c0_52, %c0_53, %c0_54] : memref<1x1x1x128xf32, #tpu.memory_space<vmem>>, vector<1x1x1x128xf32>
      %91 = vector.shape_cast %90 : vector<1x1x1x128xf32> to vector<1x128xf32>
      %92 = vector.shape_cast %89 : vector<1x128xf32> to vector<1x1x1x128xf32>
      tpu.vector_store %arg5[%c0_51, %c0_52, %c0_53, %c0_54], %92 {strides = array<i32>} : memref<1x1x1x128xf32, #tpu.memory_space<vmem>>, vector<1x1x1x128xf32>,
      %c0_55 = arith.constant 0 : index
      %c0_56 = arith.constant 0 : index
      %93 = vector.load %arg9[%c0_55, %c0_56] : memref<1x128xf32, #tpu.memory_space<vmem>>, vector<1x128xf32>
      %cst_57 = arith.constant dense<0.000000e+00> : vector<128xf32>
      %94 = vector.multi_reduction <add>, %93, %cst_57 [0] : vector<1x128xf32> to vector<128xf32>
      %95 = vector.shape_cast %94 : vector<128xf32> to vector<1x128xf32>
      %c0_58 = arith.constant 0 : index
      %c0_59 = arith.constant 0 : index
      %c0_60 = arith.constant 0 : index
      %c0_61 = arith.constant 0 : index
      %96 = vector.load %arg6[%c0_58, %c0_59, %c0_60, %c0_61] : memref<1x1x1x128xf32, #tpu.memory_space<vmem>>, vector<1x1x1x128xf32>
      %97 = vector.shape_cast %96 : vector<1x1x1x128xf32> to vector<1x128xf32>
      %98 = vector.shape_cast %95 : vector<1x128xf32> to vector<1x1x1x128xf32>
      tpu.vector_store %arg6[%c0_58, %c0_59, %c0_60, %c0_61], %98 {strides = array<i32>} : memref<1x1x1x128xf32, #tpu.memory_space<vmem>>, vector<1x1x1x128xf32>,
      %c0_62 = arith.constant 0 : index
      %c0_63 = arith.constant 0 : index
      %99 = vector.load %arg10[%c0_62, %c0_63] : memref<1x128xf32, #tpu.memory_space<vmem>>, vector<1x128xf32>
      %cst_64 = arith.constant dense<0.000000e+00> : vector<128xf32>
      %100 = vector.multi_reduction <add>, %99, %cst_64 [0] : vector<1x128xf32> to vector<128xf32>
      %101 = vector.shape_cast %100 : vector<128xf32> to vector<1x128xf32>
      %c0_65 = arith.constant 0 : index
      %c0_66 = arith.constant 0 : index
      %c0_67 = arith.constant 0 : index
      %c0_68 = arith.constant 0 : index
      %102 = vector.load %arg7[%c0_65, %c0_66, %c0_67, %c0_68] : memref<1x1x1x128xf32, #tpu.memory_space<vmem>>, vector<1x1x1x128xf32>
      %103 = vector.shape_cast %102 : vector<1x1x1x128xf32> to vector<1x128xf32>
      %104 = vector.shape_cast %101 : vector<1x128xf32> to vector<1x1x1x128xf32>
      tpu.vector_store %arg7[%c0_65, %c0_66, %c0_67, %c0_68], %104 {strides = array<i32>} : memref<1x1x1x128xf32, #tpu.memory_space<vmem>>, vector<1x1x1x128xf32>,
    } else {
    }
    return
  }
  func.func @transform_0(%arg0: i32, %arg1: i32, %arg2: i32) -> (i32, i32, i32, i32) {
    %c1_i32 = arith.constant 1 : i32
    %0 = arith.muli %arg0, %c1_i32 : i32
    %1 = arith.addi %0, %arg2 : i32
    %c0_i32 = arith.constant 0 : i32
    %2 = arith.minsi %1, %c0_i32 : i32
    %c0_i32_0 = arith.constant 0 : i32
    %c0_i32_1 = arith.constant 0 : i32
    %c0_i32_2 = arith.constant 0 : i32
    return %arg1, %c0_i32_0, %2, %c0_i32_1 : i32, i32, i32, i32
  }
  func.func @transform_1(%arg0: i32, %arg1: i32, %arg2: i32) -> (i32, i32, i32, i32) {
    %c1_i32 = arith.constant 1 : i32
    %0 = arith.muli %arg0, %c1_i32 : i32
    %1 = arith.addi %0, %arg2 : i32
    %c0_i32 = arith.constant 0 : i32
    %2 = arith.minsi %1, %c0_i32 : i32
    %c0_i32_0 = arith.constant 0 : i32
    %c0_i32_1 = arith.constant 0 : i32
    %c0_i32_2 = arith.constant 0 : i32
    return %arg1, %c0_i32_0, %2, %c0_i32_1 : i32, i32, i32, i32
  }
  func.func @transform_2(%arg0: i32, %arg1: i32, %arg2: i32) -> (i32, i32, i32, i32) {
    %c0_i32 = arith.constant 0 : i32
    %c0_i32_0 = arith.constant 0 : i32
    %c0_i32_1 = arith.constant 0 : i32
    return %arg0, %arg1, %c0_i32, %c0_i32_0 : i32, i32, i32, i32
  }
  func.func @transform_3(%arg0: i32, %arg1: i32, %arg2: i32) -> (i32, i32, i32, i32) {
    %c0_i32 = arith.constant 0 : i32
    %c0_i32_0 = arith.constant 0 : i32
    %c0_i32_1 = arith.constant 0 : i32
    return %arg0, %arg1, %c0_i32, %c0_i32_0 : i32, i32, i32, i32
  }
  func.func @transform_4(%arg0: i32, %arg1: i32, %arg2: i32) -> (i32, i32, i32, i32) {
    %c0_i32 = arith.constant 0 : i32
    %c0_i32_0 = arith.constant 0 : i32
    %c0_i32_1 = arith.constant 0 : i32
    return %arg0, %arg1, %c0_i32, %c0_i32_0 : i32, i32, i32, i32
  }
}

</mosaic_0001>

<llo_original>
// kernel: tpu_custom_call.1
$region0: #{tpu_custom_call.1}
  #allocation0 [shape = 'u32[]', space=smem, size = 0x4, offset = 0x4, fixed_abs, tag = 'smem constant byte address 0x4 - core index']
  #allocation1 [shape = 'u32[72,128]{1,0:T(1,128)}', space=vmem, size = 0x9000, scoped, tag = 'internal scratch']
  #allocation2 [shape = 'f32[1,128]{1,0:T(1,128)}', space=vmem, size = 0x200, scoped, tag = 'scratch operand']
  #allocation3 [shape = 'f32[1,128]{1,0:T(1,128)}', space=vmem, size = 0x200, scoped, tag = 'scratch operand']
  #allocation4 [shape = 'f32[1,128]{1,0:T(1,128)}', space=vmem, size = 0x200, scoped, tag = 'scratch operand']
  %s0 = inlined_call_operand.hbm [shape: f32[2,4,2,128], index: 0, kind: input, shape index: {}]
  %s1 = inlined_call_operand.hbm [shape: s32[2,1,2,128], index: 1, kind: input, shape index: {}]
  %s2 = inlined_call_operand.hbm [shape: f32[1,2,1,128], index: 2, kind: output, shape index: {0}]
  %s3 = inlined_call_operand.hbm [shape: f32[1,2,1,128], index: 3, kind: output, shape index: {1}]
  %s4 = inlined_call_operand.hbm [shape: f32[1,2,1,128], index: 4, kind: output, shape index: {2}]
  %5 = xla_tuple %s2, %s3, %s4
  %s6 = sld [smem:[#allocation0]]
  $region73: #{tpu_custom_call.1} parent=0
    _
  %s8 = ssub.s32 1, %s6
  %s9 = scalar_select 0, %s8, %s6
  $region1: #{tpu_custom_call.1} parent=0
    #allocation5 [shape = 'u8[8192]{0}', space=vmem, size = 0x2000, scoped, tag = 'input window, operand 0']
    #allocation6 [shape = 's32[2]{0}', space=sflag, size = 0x8, scoped, tag = 'scoped memory for tpu_custom_call.1']
    #allocation7 [shape = 's32[2]{0}', space=sflag, size = 0x8, scoped, tag = 'scoped memory for tpu_custom_call.1']
    #allocation8 [shape = 'u8[2048]{0}', space=vmem, size = 0x800, scoped, tag = 'input window, operand 1']
    #allocation9 [shape = 's32[2]{0}', space=sflag, size = 0x8, scoped, tag = 'scoped memory for tpu_custom_call.1']
    #allocation10 [shape = 'u8[1024]{0}', space=vmem, size = 0x400, scoped, tag = 'output window, operand 0']
    #allocation11 [shape = 'u8[1024]{0}', space=vmem, size = 0x400, scoped, tag = 'output window, operand 1']
    #allocation12 [shape = 's32[2]{0}', space=sflag, size = 0x8, scoped, tag = 'scoped memory for tpu_custom_call.1']
    #allocation13 [shape = 'u8[1024]{0}', space=vmem, size = 0x400, scoped, tag = 'output window, operand 2']
    %10 = vsyncpa [#allocation6], 0
    %s11 = scalar_lea.sflag [#allocation6], 1
    %12 = vsyncpa %s11, 0
    %13 = vsyncpa [#allocation9], 0
    %s14 = scalar_lea.sflag [#allocation9], 1
    %15 = vsyncpa %s14, 0
    %16 = vsyncpa [#allocation7], 0
    %s17 = scalar_lea.sflag [#allocation7], 1
    %18 = vsyncpa %s17, 0
    %19 = vsyncpa [#allocation12], 0
    %s20 = scalar_lea.sflag [#allocation12], 1
    %21 = vsyncpa %s20, 0
    loop: start=0, step=1, limit=4
    $region2: #{tpu_custom_call.1} parent=1 // loop_pre_header
      _
    $region3: #{tpu_custom_call.1} parent=1 // loop_header
      %s23 = sphi 0, %s27
      %p24 = scmp.ge.s32.totalorder %s23, 4
      %s30 = sphi 0, %s49
      %s31 = sphi 0, %s45
      %s32 = sphi 0, %s41
      %s33 = sphi 0, %s30
      %s34 = sphi 0, %s31
      %s35 = sphi 0, %s32
      %s36 = sphi 0, %s33
      %s37 = sphi 0, %s34
      %s38 = sphi 0, %s35
      %s60 = sphi 0, %s62
      %s63 = sphi 0, %s60
      %s64 = sphi 0, %s63
      %s80 = sphi 0, %s64
      %s94 = sphi 0, %s96
      %s97 = sphi 0, %s94
      %s98 = sphi 0, %s97
      %s114 = sphi 0, %s98
      %s122 = sphi 0, %s124
      %s125 = sphi 0, %s122
      %s126 = sphi 0, %s125
      %s142 = sphi 0, %s126
      %s150 = sphi 0, %s152
      %s153 = sphi 0, %s150
      %s154 = sphi 0, %s153
      %s170 = sphi 0, %s154
      %s178 = sphi 0, %s180
      %s181 = sphi 0, %s178
      %s182 = sphi 0, %s181
      %s198 = sphi 0, %s182
    $region4: #{tpu_custom_call.1} parent=1 // loop_header_branch
      %26 = sbr.rel (%p24) target = $region8
    $region5: #{tpu_custom_call.1} parent=1 // loop_body
      %s28 = ssub.s32 %s23, 1
      %s29 = ssub.s32 %s23, 2
      %s39 = sadd.s32 1, %s32
      %p40 = scmp.ge.s32.totalorder %s39, 1
      %s41 = scalar_select %p40, 0, %s39
      %s42 = sadd.s32 1, %s31
      %s43 = scalar_select %p40, %s42, %s31
      %p44 = scmp.ge.s32.totalorder %s43, 2
      %s45 = scalar_select %p44, 0, %s43
      %s46 = sadd.s32 1, %s30
      %s47 = scalar_select %p44, %s46, %s30
      %p48 = scmp.ge.s32.totalorder %s47, 1
      %s49 = scalar_select %p48, 0, %s47
      %s50 = sadd.s32 %s30, %s32
      %p51 = scmp.lt.s32.totalorder %s50, 0
      %s52 = scalar_select %p51, %s50, 0
      %s53 = sadd.s32 %s49, %s41
      %p54 = scmp.lt.s32.totalorder %s53, 0
      %s55 = scalar_select %p54, %s53, 0
      %s56 = ssub.s32 %s31, %s45
      %s57 = ssub.s32 %s52, %s55
      %s58 = sor.u32 %s56, %s57
      %p59 = scmp.eq.s32.totalorder %s58, 0
      %s61 = sadd.s32 %s60, 1
      %s62 = scalar_select %p59, %s60, %s61
      %p65 = pneg %p59
      %p66 = scmp.eq.s32.totalorder %s23, 1
      %p67 = por %p65, %p66
      %p68 = scmp.ne.s32.totalorder %s60, %s63
      %p69 = scmp.eq.s32.totalorder %s23, 0
      %p70 = por %p68, %p69
      %p71 = scmp.ne.s32.totalorder %s60, %s63
      %p72 = scmp.eq.s32.totalorder %s28, 1
      %p73 = por %p71, %p72
      %p74 = scmp.ne.s32.totalorder %s63, %s64
      %p75 = scmp.eq.s32.totalorder %s28, 0
      %p76 = por %p74, %p75
      %p77 = scmp.ne.s32.totalorder %s63, %s64
      %p78 = scmp.eq.s32.totalorder %s29, 1
      %p79 = por %p77, %p78
      %p81 = scmp.ne.s32.totalorder %s64, %s80
      %p82 = scmp.eq.s32.totalorder %s29, 0
      %p83 = por %p81, %p82
      %s84 = sadd.s32 %s30, %s32
      %p85 = scmp.lt.s32.totalorder %s84, 0
      %s86 = scalar_select %p85, %s84, 0
      %s87 = sadd.s32 %s49, %s41
      %p88 = scmp.lt.s32.totalorder %s87, 0
      %s89 = scalar_select %p88, %s87, 0
      %s90 = ssub.s32 %s31, %s45
      %s91 = ssub.s32 %s86, %s89
      %s92 = sor.u32 %s90, %s91
      %p93 = scmp.eq.s32.totalorder %s92, 0
      %s95 = sadd.s32 %s94, 1
      %s96 = scalar_select %p93, %s94, %s95
      %p99 = pneg %p93
      %p100 = scmp.eq.s32.totalorder %s23, 1
      %p101 = por %p99, %p100
      %p102 = scmp.ne.s32.totalorder %s94, %s97
      %p103 = scmp.eq.s32.totalorder %s23, 0
      %p104 = por %p102, %p103
      %p105 = scmp.ne.s32.totalorder %s94, %s97
      %p106 = scmp.eq.s32.totalorder %s28, 1
      %p107 = por %p105, %p106
      %p108 = scmp.ne.s32.totalorder %s97, %s98
      %p109 = scmp.eq.s32.totalorder %s28, 0
      %p110 = por %p108, %p109
      %p111 = scmp.ne.s32.totalorder %s97, %s98
      %p112 = scmp.eq.s32.totalorder %s29, 1
      %p113 = por %p111, %p112
      %p115 = scmp.ne.s32.totalorder %s98, %s114
      %p116 = scmp.eq.s32.totalorder %s29, 0
      %p117 = por %p115, %p116
      %s118 = ssub.s32 %s30, %s49
      %s119 = ssub.s32 %s31, %s45
      %s120 = sor.u32 %s118, %s119
      %p121 = scmp.eq.s32.totalorder %s120, 0
      %s123 = sadd.s32 %s122, 1
      %s124 = scalar_select %p121, %s122, %s123
      %p127 = pneg %p121
      %p128 = scmp.eq.s32.totalorder %s23, 1
      %p129 = por %p127, %p128
      %p130 = scmp.ne.s32.totalorder %s122, %s125
      %p131 = scmp.eq.s32.totalorder %s23, 0
      %p132 = por %p130, %p131
      %p133 = scmp.ne.s32.totalorder %s122, %s125
      %p134 = scmp.eq.s32.totalorder %s28, 1
      %p135 = por %p133, %p134
      %p136 = scmp.ne.s32.totalorder %s125, %s126
      %p137 = scmp.eq.s32.totalorder %s28, 0
      %p138 = por %p136, %p137
      %p139 = scmp.ne.s32.totalorder %s125, %s126
      %p140 = scmp.eq.s32.totalorder %s29, 1
      %p141 = por %p139, %p140
      %p143 = scmp.ne.s32.totalorder %s126, %s142
      %p144 = scmp.eq.s32.totalorder %s29, 0
      %p145 = por %p143, %p144
      %s146 = ssub.s32 %s30, %s49
      %s147 = ssub.s32 %s31, %s45
      %s148 = sor.u32 %s146, %s147
      %p149 = scmp.eq.s32.totalorder %s148, 0
      %s151 = sadd.s32 %s150, 1
      %s152 = scalar_select %p149, %s150, %s151
      %p155 = pneg %p149
      %p156 = scmp.eq.s32.totalorder %s23, 1
      %p157 = por %p155, %p156
      %p158 = scmp.ne.s32.totalorder %s150, %s153
      %p159 = scmp.eq.s32.totalorder %s23, 0
      %p160 = por %p158, %p159
      %p161 = scmp.ne.s32.totalorder %s150, %s153
      %p162 = scmp.eq.s32.totalorder %s28, 1
      %p163 = por %p161, %p162
      %p164 = scmp.ne.s32.totalorder %s153, %s154
      %p165 = scmp.eq.s32.totalorder %s28, 0
      %p166 = por %p164, %p165
      %p167 = scmp.ne.s32.totalorder %s153, %s154
      %p168 = scmp.eq.s32.totalorder %s29, 1
      %p169 = por %p167, %p168
      %p171 = scmp.ne.s32.totalorder %s154, %s170
      %p172 = scmp.eq.s32.totalorder %s29, 0
      %p173 = por %p171, %p172
      %s174 = ssub.s32 %s30, %s49
      %s175 = ssub.s32 %s31, %s45
      %s176 = sor.u32 %s174, %s175
      %p177 = scmp.eq.s32.totalorder %s176, 0
      %s179 = sadd.s32 %s178, 1
      %s180 = scalar_select %p177, %s178, %s179
      %p183 = pneg %p177
      %p184 = scmp.eq.s32.totalorder %s23, 1
      %p185 = por %p183, %p184
      %p186 = scmp.ne.s32.totalorder %s178, %s181
      %p187 = scmp.eq.s32.totalorder %s23, 0
      %p188 = por %p186, %p187
      %p189 = scmp.ne.s32.totalorder %s178, %s181
      %p190 = scmp.eq.s32.totalorder %s28, 1
      %p191 = por %p189, %p190
      %p192 = scmp.ne.s32.totalorder %s181, %s182
      %p193 = scmp.eq.s32.totalorder %s28, 0
      %p194 = por %p192, %p193
      %p195 = scmp.ne.s32.totalorder %s181, %s182
      %p196 = scmp.eq.s32.totalorder %s29, 1
      %p197 = por %p195, %p196
      %p199 = scmp.ne.s32.totalorder %s182, %s198
      %p200 = scmp.eq.s32.totalorder %s29, 0
      %p201 = por %p199, %p200
      %p202 = scmp.le.s32.totalorder 1, %s23
      %p203 = scmp.lt.s32.totalorder %s23, 3
      %p204 = pnand %p202, %p203
      %p205 = pneg %p204
      // Predicated region
      $region9: #{tpu_custom_call.1} parent=5 // pred_check
        _
      $region10: #{tpu_custom_call.1} parent=5 // pred_check_branch
        %207 = sbr.rel (%p204) target = $region12
      $region11: #{tpu_custom_call.1} parent=5 // pred_region
        %s208 = ssub.s32 %s23, 1
      $region12: #{tpu_custom_call.1} parent=5 // pred_fallthru
        _
      %p209 = scmp.lt.s32.totalorder %s23, 2
      // Predicated region
      $region13: #{tpu_custom_call.1} parent=5 // pred_check
        %p210 = pneg %p209
      $region14: #{tpu_custom_call.1} parent=5 // pred_check_branch
        %212 = sbr.rel (%p210) target = $region16
      $region15: #{tpu_custom_call.1} parent=5 // pred_region
        // Predicated region
        $region17: #{tpu_custom_call.1} parent=15 // pred_check
          %p213 = pneg %p70
        $region18: #{tpu_custom_call.1} parent=15 // pred_check_branch
          %215 = sbr.rel (%p213) target = $region20
        $region19: #{tpu_custom_call.1} parent=15 // pred_region
          %s216 = sand.u32 %s60, 1
          %s217 = scalar_lea.sflag [#allocation6], %s216
          %s218 = sand.u32 %s60, 1
          %s219 = smul.addr %s218, 8
          %s220 = scalar_lea.vmem [#allocation5], %s219
          %s221 = sadd.s32 %s30, %s32
          %p222 = scmp.lt.s32.totalorder %s221, 0
          %s223 = scalar_select %p222, %s221, 0
          %225 = vsyncadd %s217, 0
          %s226 = smul.addr %s31, 4
          %s227 = sadd.s32 %s223, %s226
          %s228 = smul.addr %s227, 2
          %s229 = scalar_lea.hbm %s0, %s228
          %s230 = sshll.u32 %s229, 4
          %s231 = int_to_ptr.hbm [resolvable:$true] %s230
          %s232 = sshll.u32 %s220, 4
          %s233 = int_to_ptr.vmem [resolvable:$true] %s232
          %238 = dma.hbm_to_vmem [thread:$0]  %s231, 128, %s233, %s217, 32, 32, 2
        $region20: #{tpu_custom_call.1} parent=15 // pred_fallthru
          _
        // Predicated region
        $region21: #{tpu_custom_call.1} parent=15 // pred_check
          %p239 = pneg %p104
        $region22: #{tpu_custom_call.1} parent=15 // pred_check_branch
          %241 = sbr.rel (%p239) target = $region24
        $region23: #{tpu_custom_call.1} parent=15 // pred_region
          %s242 = sand.u32 %s94, 1
          %s243 = scalar_lea.sflag [#allocation9], %s242
          %s244 = sand.u32 %s94, 1
          %s245 = smul.addr %s244, 2
          %s246 = scalar_lea.vmem [#allocation8], %s245
          %s247 = sadd.s32 %s30, %s32
          %p248 = scmp.lt.s32.totalorder %s247, 0
          %s249 = scalar_select %p248, %s247, 0
          %251 = vsyncadd %s243, 0
          %s252 = sadd.s32 %s249, %s31
          %s253 = smul.addr %s252, 2
          %s254 = scalar_lea.hbm %s1, %s253
          %s256 = sshll.u32 %s254, 4
          %s257 = int_to_ptr.hbm [resolvable:$true] %s256
          %s258 = sshll.u32 %s246, 4
          %s259 = int_to_ptr.vmem [resolvable:$true] %s258
          %261 = dma.hbm_to_vmem [thread:$0]  %s257, 32, %s259, %s243
        $region24: #{tpu_custom_call.1} parent=15 // pred_fallthru
          _
      $region16: #{tpu_custom_call.1} parent=5 // pred_fallthru
        _
      %p262 = scmp.le.s32.totalorder 1, %s23
      %p263 = scmp.lt.s32.totalorder %s23, 3
      %p264 = pnand %p262, %p263
      %p265 = pneg %p264
      // Predicated region
      $region25: #{tpu_custom_call.1} parent=5 // pred_check
        _
      $region26: #{tpu_custom_call.1} parent=5 // pred_check_branch
        %267 = sbr.rel (%p264) target = $region28
      $region27: #{tpu_custom_call.1} parent=5 // pred_region
        %s268 = ssub.s32 %s23, 1
        %s269 = sand.u32 %s63, 1
        %s270 = scalar_lea.sflag [#allocation6], %s269
        %s271 = sand.u32 %s63, 1
        %s272 = smul.addr %s271, 8
        %s273 = scalar_lea.vmem [#allocation5], %s272
        // Predicated region
        $region29: #{tpu_custom_call.1} parent=27 // pred_check
          %p274 = pneg %p76
        $region30: #{tpu_custom_call.1} parent=27 // pred_check_branch
          %276 = sbr.rel (%p274) target = $region32
        $region31: #{tpu_custom_call.1} parent=27 // pred_region
          %278 = dma.done %s270, 128
        $region32: #{tpu_custom_call.1} parent=27 // pred_fallthru
          _
        %s279 = sand.u32 %s97, 1
        %s280 = scalar_lea.sflag [#allocation9], %s279
        %s281 = sand.u32 %s97, 1
        %s282 = smul.addr %s281, 2
        %s283 = scalar_lea.vmem [#allocation8], %s282
        // Predicated region
        $region33: #{tpu_custom_call.1} parent=27 // pred_check
          %p284 = pneg %p110
        $region34: #{tpu_custom_call.1} parent=27 // pred_check_branch
          %286 = sbr.rel (%p284) target = $region36
        $region35: #{tpu_custom_call.1} parent=27 // pred_region
          %288 = dma.done %s280, 32
        $region36: #{tpu_custom_call.1} parent=27 // pred_fallthru
          _
        %s289 = sand.u32 %s63, 1
        %s290 = scalar_lea.sflag [#allocation6], %s289
        %s291 = sand.u32 %s63, 1
        %s292 = smul.addr %s291, 8
        %s293 = scalar_lea.vmem [#allocation5], %s292
        %p294 = pneg %p76
        %p295 = pneg %p73
        %s296 = sand.u32 %s97, 1
        %s297 = scalar_lea.sflag [#allocation9], %s296
        %s298 = sand.u32 %s97, 1
        %s299 = smul.addr %s298, 2
        %s300 = scalar_lea.vmem [#allocation8], %s299
        %p301 = pneg %p110
        %p302 = pneg %p107
        %p303 = pneg %p138
        %p304 = pneg %p135
        %s305 = sand.u32 %s125, 1
        %s306 = scalar_lea.sflag [#allocation7], %s305
        %s307 = sand.u32 %s125, 1
        %s308 = scalar_lea.vmem [#allocation10], %s307
        %p309 = pneg %p166
        %p310 = pneg %p163
        %s311 = sand.u32 %s28, 1
        %s312 = scalar_lea.sflag [#allocation12], %s311
        %s313 = sand.u32 %s153, 1
        %s314 = scalar_lea.vmem [#allocation11], %s313
        %p315 = pneg %p194
        %p316 = pneg %p191
        %s317 = sand.u32 %s28, 1
        %s318 = scalar_lea.sflag [#allocation12], %s317
        %s319 = sand.u32 %s181, 1
        %s320 = scalar_lea.vmem [#allocation13], %s319
        %s321 = sadd.s32 %s33, %s35
        %p322 = scmp.lt.s32.totalorder %s321, 0
        %s323 = scalar_select %p322, %s321, 0
        %s324 = sadd.s32 %s33, %s35
        %p325 = scmp.lt.s32.totalorder %s324, 0
        %s326 = scalar_select %p325, %s324, 0
        %p327 = scmp.eq.s32.totalorder %s35, 0
        // Predicated region
        $region37: #{tpu_custom_call.1} parent=27 // pred_check
          %p328 = pneg %p327
        $region38: #{tpu_custom_call.1} parent=27 // pred_check_branch
          %330 = sbr.rel (%p328) target = $region40
        $region39: #{tpu_custom_call.1} parent=27 // pred_region
          %331 = vst [vmem:[#allocation2] sm:$0x1] 0.0
          %332 = vst [vmem:[#allocation3] sm:$0x1] 0.0
          %333 = vst [vmem:[#allocation4] sm:$0x1] 0.0
        $region40: #{tpu_custom_call.1} parent=27 // pred_fallthru
          _
        %v334 = vld [vmem:[%s283] sm:$0x3]
        %v335 = vld [vmem:[%s273] sm:$0x3]
        %vm336 = vcmp.eq.s32.totalorder %v334, 0
        %v337 = vsel %vm336, %v335, 0.0
        %s338 = scalar_lea.vmem %s273, 2 [#allocation5]
        %v339 = vld [vmem:[%s338] sm:$0x3]
        %vm340 = vcmp.eq.s32.totalorder %v334, 1
        %v341 = vsel %vm340, %v339, %v337
        %vm342 = vcmp.gt.f32.partialorder %v339, %v335
        %v343 = vsel %vm342, 1, 0
        %v344 = vmax.f32 %v335, %v339
        %s345 = scalar_lea.vmem %s273, 4 [#allocation5]
        %v346 = vld [vmem:[%s345] sm:$0x3]
        %vm347 = vcmp.eq.s32.totalorder %v334, 2
        %v348 = vsel %vm347, %v346, %v341
        %vm349 = vcmp.gt.f32.partialorder %v346, %v344
        %v350 = vsel %vm349, 2, %v343
        %v351 = vmax.f32 %v344, %v346
        %s352 = scalar_lea.vmem %s273, 6 [#allocation5]
        %v353 = vld [vmem:[%s352] sm:$0x3]
        %vm354 = vcmp.eq.s32.totalorder %v334, 3
        %v355 = vsel %vm354, %v353, %v348
        %vm356 = vcmp.gt.f32.partialorder %v353, %v351
        %v357 = vsel %vm356, 3, %v350
        %vm358 = vcmp.eq.s32.totalorder %v357, %v334
        %s359 = sadd.s32 %s33, %s35
        %v360 = vlaneseq
        %v361 = vshrl.u32 %v360, 7
        %v362 = vlaneseq
        %v363 = vand.u32 %v362, 127
        %s364 = smul.u32 %s359, 2
        %v365 = vstv %s364
        %v366 = vadd.s32 %v365, %v361
        %v367 = vmul.u32 %v366, 128
        %v368 = vadd.s32 %v367, %v363
        %vm369 = vcmp.lt.s32.totalorder %v368, 256
        %v370 = vsel %vm369, %v355, 1.0
        %v371 = vsub.f32 1.0, %v370
        %v372 = vmul.f32 %v371, %v371
        %v373 = vsub.f32 0.0, %v372
        %v374 = vadd.f32 %v370, 1e-06
        %v375 = vlog2.pop %v374
        %v376 = vmul.f32 %v375, 0.6931472
        %v377 = vmul.f32 %v373, %v376
        %v378 = vsel %vm369, %v377, 0.0
        %vm379 = vmand %vm358, %vm369
        %v380 = vsel %vm379, 1.0, 0.0
        %v381 = vld [vmem:[#allocation4] sm:$0x1]
        %vm382 = vcmask 1041408
        %v383 = vsel %vm382, %v378, 0.0
        %v384 = vrot.slane %v383, 4
        %v385 = vadd.f32 %v383, %v384
        %v386 = vrot.slane %v385, 2
        %v387 = vadd.f32 %v385, %v386
        %v388 = vrot.slane %v387, 1
        %v389 = vadd.f32 %v387, %v388
        %v390 = vadd.f32 %v381, %v389
        %391 = vst [vmem:[#allocation4] sm:$0x1] %v390
        %v392 = vld [vmem:[#allocation3] sm:$0x1]
        %v393 = vsel %vm382, %v380, 0.0
        %v394 = vrot.slane %v393, 4
        %v395 = vadd.f32 %v393, %v394
        %v396 = vrot.slane %v395, 2
        %v397 = vadd.f32 %v395, %v396
        %v398 = vrot.slane %v397, 1
        %v399 = vadd.f32 %v397, %v398
        %v400 = vadd.f32 %v392, %v399
        %401 = vst [vmem:[#allocation3] sm:$0x1] %v400
        %v402 = vld [vmem:[#allocation2] sm:$0x1]
        %v403 = vmul.f32 %v380, %v378
        %v404 = vsel %vm382, %v403, 0.0
        %v405 = vrot.slane %v404, 4
        %v406 = vadd.f32 %v404, %v405
        %v407 = vrot.slane %v406, 2
        %v408 = vadd.f32 %v406, %v407
        %v409 = vrot.slane %v408, 1
        %v410 = vadd.f32 %v408, %v409
        %v411 = vadd.f32 %v402, %v410
        %412 = vst [vmem:[#allocation2] sm:$0x1] %v411
        // Predicated region
        $region41: #{tpu_custom_call.1} parent=27 // pred_check
          %p413 = pneg %p327
        $region42: #{tpu_custom_call.1} parent=27 // pred_check_branch
          %415 = sbr.rel (%p413) target = $region44
        $region43: #{tpu_custom_call.1} parent=27 // pred_region
          %v416 = vld [vmem:[#allocation2] sm:$0x1]
          %v417 = vadd.f32 %v416, 0.0
          %418 = vst [vmem:[%s308] sm:$0x1] %v417
          %v419 = vld [vmem:[#allocation3] sm:$0x1]
          %v420 = vadd.f32 %v419, 0.0
          %421 = vst [vmem:[%s314] sm:$0x1] %v420
          %v422 = vld [vmem:[#allocation4] sm:$0x1]
          %v423 = vadd.f32 %v422, 0.0
          %424 = vst [vmem:[%s320] sm:$0x1] %v423
        $region44: #{tpu_custom_call.1} parent=27 // pred_fallthru
          _
        %s425 = sand.u32 %s125, 1
        %s426 = scalar_lea.sflag [#allocation7], %s425
        %s427 = sand.u32 %s125, 1
        %s428 = scalar_lea.vmem [#allocation10], %s427
        %s429 = sand.u32 %s28, 1
        %s430 = scalar_lea.sflag [#allocation12], %s429
        %s431 = sand.u32 %s153, 1
        %s432 = scalar_lea.vmem [#allocation11], %s431
        %s433 = sand.u32 %s28, 1
        %s434 = scalar_lea.sflag [#allocation12], %s433
        %s435 = sand.u32 %s181, 1
        %s436 = scalar_lea.vmem [#allocation13], %s435
        // Predicated region
        $region45: #{tpu_custom_call.1} parent=27 // pred_check
          %p437 = pneg %p135
        $region46: #{tpu_custom_call.1} parent=27 // pred_check_branch
          %439 = sbr.rel (%p437) target = $region48
        $region47: #{tpu_custom_call.1} parent=27 // pred_region
          %441 = vsyncadd %s426, 0
          %s442 = smul.addr %s33, 2
          %s443 = sadd.s32 %s34, %s442
          %s444 = scalar_lea.hbm %s2, %s443
          %s446 = sshll.u32 %s428, 4
          %s447 = int_to_ptr.vmem [resolvable:$true] %s446
          %s448 = sshll.u32 %s444, 4
          %s449 = int_to_ptr.hbm [resolvable:$true] %s448
          %451 = dma.vmem_to_hbm [thread:$0]  %s447, 16, %s449, %s426
        $region48: #{tpu_custom_call.1} parent=27 // pred_fallthru
          _
        // Predicated region
        $region49: #{tpu_custom_call.1} parent=27 // pred_check
          %p452 = pneg %p163
        $region50: #{tpu_custom_call.1} parent=27 // pred_check_branch
          %454 = sbr.rel (%p452) target = $region52
        $region51: #{tpu_custom_call.1} parent=27 // pred_region
          %456 = vsyncadd %s430, 0
          %s457 = smul.addr %s33, 2
          %s458 = sadd.s32 %s34, %s457
          %s459 = scalar_lea.hbm %s3, %s458
          %s461 = sshll.u32 %s432, 4
          %s462 = int_to_ptr.vmem [resolvable:$true] %s461
          %s463 = sshll.u32 %s459, 4
          %s464 = int_to_ptr.hbm [resolvable:$true] %s463
          %466 = dma.vmem_to_hbm [thread:$0]  %s462, 16, %s464, %s430
        $region52: #{tpu_custom_call.1} parent=27 // pred_fallthru
          _
        // Predicated region
        $region53: #{tpu_custom_call.1} parent=27 // pred_check
          %p467 = pneg %p191
        $region54: #{tpu_custom_call.1} parent=27 // pred_check_branch
          %469 = sbr.rel (%p467) target = $region56
        $region55: #{tpu_custom_call.1} parent=27 // pred_region
          %471 = vsyncadd %s434, 0
          %s472 = smul.addr %s33, 2
          %s473 = sadd.s32 %s34, %s472
          %s474 = scalar_lea.hbm %s4, %s473
          %s476 = sshll.u32 %s436, 4
          %s477 = int_to_ptr.vmem [resolvable:$true] %s476
          %s478 = sshll.u32 %s474, 4
          %s479 = int_to_ptr.hbm [resolvable:$true] %s478
          %481 = dma.vmem_to_hbm [thread:$0]  %s477, 16, %s479, %s434
        $region56: #{tpu_custom_call.1} parent=27 // pred_fallthru
          _
      $region28: #{tpu_custom_call.1} parent=5 // pred_fallthru
        _
      %p482 = scmp.le.s32.totalorder 2, %s23
      // Predicated region
      $region57: #{tpu_custom_call.1} parent=5 // pred_check
        %p483 = pneg %p482
      $region58: #{tpu_custom_call.1} parent=5 // pred_check_branch
        %485 = sbr.rel (%p483) target = $region60
      $region59: #{tpu_custom_call.1} parent=5 // pred_region
        %s486 = ssub.s32 %s23, 2
        // Predicated region
        $region61: #{tpu_custom_call.1} parent=59 // pred_check
          %p487 = pneg %p141
        $region62: #{tpu_custom_call.1} parent=59 // pred_check_branch
          %489 = sbr.rel (%p487) target = $region64
        $region63: #{tpu_custom_call.1} parent=59 // pred_region
          %s490 = sand.u32 %s126, 1
          %s491 = scalar_lea.sflag [#allocation7], %s490
          %s492 = sand.u32 %s126, 1
          %s493 = scalar_lea.vmem [#allocation10], %s492
          %495 = dma.done %s491, 16
        $region64: #{tpu_custom_call.1} parent=59 // pred_fallthru
          _
        // Predicated region
        $region65: #{tpu_custom_call.1} parent=59 // pred_check
          %p496 = pneg %p169
        $region66: #{tpu_custom_call.1} parent=59 // pred_check_branch
          %498 = sbr.rel (%p496) target = $region68
        $region67: #{tpu_custom_call.1} parent=59 // pred_region
          %s499 = sand.u32 %s29, 1
          %s500 = scalar_lea.sflag [#allocation12], %s499
          %s501 = sand.u32 %s154, 1
          %s502 = scalar_lea.vmem [#allocation11], %s501
          %504 = dma.done %s500, 16
        $region68: #{tpu_custom_call.1} parent=59 // pred_fallthru
          _
        // Predicated region
        $region69: #{tpu_custom_call.1} parent=59 // pred_check
          %p505 = pneg %p197
        $region70: #{tpu_custom_call.1} parent=59 // pred_check_branch
          %507 = sbr.rel (%p505) target = $region72
        $region71: #{tpu_custom_call.1} parent=59 // pred_region
          %s508 = sand.u32 %s29, 1
          %s509 = scalar_lea.sflag [#allocation12], %s508
          %s510 = sand.u32 %s182, 1
          %s511 = scalar_lea.vmem [#allocation13], %s510
          %513 = dma.done %s509, 16
        $region72: #{tpu_custom_call.1} parent=59 // pred_fallthru
          _
      $region60: #{tpu_custom_call.1} parent=5 // pred_fallthru
        _
    $region6: #{tpu_custom_call.1} parent=1 // loop_footer
      %s27 = sadd.s32 1, %s23
    $region7: #{tpu_custom_call.1} parent=1 // loop_footer_branch
      %22 = sbr.rel target = $region3
    $region8: #{tpu_custom_call.1} parent=1 // loop_exit
      _
    %514 = vsyncpa [#allocation6], 1
    %s515 = scalar_lea.sflag [#allocation6], 1
    %516 = vsyncpa %s515, 1
    %517 = vsyncpa [#allocation9], 1
    %s518 = scalar_lea.sflag [#allocation9], 1
    %519 = vsyncpa %s518, 1
    %520 = vsyncpa [#allocation7], 1
    %s521 = scalar_lea.sflag [#allocation7], 1
    %522 = vsyncpa %s521, 1
    %523 = vsyncpa [#allocation12], 1
    %s524 = scalar_lea.sflag [#allocation12], 1
    %525 = vsyncpa %s524, 1

</llo_original>
